<compile_context>
chip_gen: v7x
topology: tpu7x:2x2x1
jax: 0.10.0
libtpu: 0.0.40
codegen_flags: <defaults>
</compile_context>

<pallas_src>
import functools

import jax
import jax.numpy as jnp
from jax import lax
from jax.experimental import pallas as pl
from jax.experimental.pallas import tpu as pltpu

NUM_ITERATIONS = 3  # stands in for args.rout_iter in the original script
# TODO(synk): argparse / nvidia-smi CUDA detection is host glue with no TPU-kernel
# equivalent; it is intentionally omitted.


def _round_up(v, m):
    return (v + m - 1) // m * m


# ----------------------------------------------------------------------------
# Routing branch (num_route_nodes != -1)
# ----------------------------------------------------------------------------
def _routing_kernel(x_ref, w_ref, e_ref, et_ref, o_ref, *, num_iterations):
    # x_ref : (R, Cin)            -- one batch element
    # w_ref : (R, Cin, NC)        -- NC = Ncaps*Cout, col nc = n*Cout + c
    # e_ref : (Ncaps, NC)         -- E[n, nc] = 1 if nc // Cout == n else 0
    # et_ref: (NC, Ncaps)         -- E^T
    # o_ref : (1, NC)
    R = x_ref.shape[0]
    x = x_ref[...]                                  # (R, Cin)  f32
    w = w_ref[...]                                  # (R, Cin, NC) f32
    E = e_ref[...]                                  # (Ncaps, NC)
    ET = et_ref[...]                                # (NC, Ncaps)

    # priors[r, nc] = sum_i x[r, i] * w[r, i, nc]
    priors = jnp.sum(x[:, :, None] * w, axis=1)     # (R, NC) f32

    def squash_blocked(s):
        # per-capsule squash over each Cout block of the lane dim
        sq = jnp.dot(s * s, ET, preferred_element_type=jnp.float32)   # (1, Ncaps)
        # sq/(1+sq)/sqrt(sq) == sqrt(sq)/(1+sq); rsqrt+recip go to the EUP slot
        scale = sq * lax.rsqrt(sq) * pl.reciprocal(1.0 + sq, approx=True)
        return s * jnp.dot(scale, E, preferred_element_type=jnp.float32)

    # ---- iteration 0: logits are all zero -> probs = 1/R (skip the softmax) ----
    s = jnp.sum(priors, axis=0, keepdims=True) * (1.0 / R)            # (1, NC)
    out = squash_blocked(s)

    if num_iterations > 1:
        # delta[r, n] = sum_c priors[r, n*Cout+c] * out[n*Cout+c]   (MXU dot)
        logits = jnp.dot(priors * out, ET, preferred_element_type=jnp.float32)  # (R, Ncaps)
        for i in range(1, num_iterations):
            # softmax over the route-node dim; logits are Cout-invariant so this
            # is only (R, Ncaps) worth of exp/normalize work.
            m = jnp.max(logits, axis=0, keepdims=True)
            el = jnp.exp(logits - m)
            probs = el * pl.reciprocal(jnp.sum(el, axis=0, keepdims=True), approx=True)
            # expand probs across each capsule's Cout block via MXU: (R,Ncaps)@(Ncaps,NC)
            probs_dense = jnp.dot(probs, E, preferred_element_type=jnp.float32)  # (R, NC)
            s = jnp.sum(probs_dense * priors, axis=0, keepdims=True)             # (1, NC)
            out = squash_blocked(s)
            if i != num_iterations - 1:
                logits = logits + jnp.dot(priors * out, ET,
                                          preferred_element_type=jnp.float32)

    o_ref[...] = out.astype(o_ref.dtype)


def capsule_routing(x, route_weights, num_iterations):
    """x: (B, R, Cin); route_weights: (Ncaps, R, Cin, Cout) -> (Ncaps, B, 1, 1, Cout)."""
    B, R, Cin = x.shape
    Ncaps, R2, Cin2, Cout = route_weights.shape
    assert (R, Cin) == (R2, Cin2)
    NC = Ncaps * Cout

    # (Ncaps, R, Cin, Cout) -> (R, Cin, Ncaps*Cout), lane-dense capsule*channel dim
    w_r = jnp.transpose(route_weights, (1, 2, 0, 3)).reshape(R, Cin, NC)
    # block-expand matrix: E[n, n*Cout + c] = 1
    E = jnp.repeat(jnp.eye(Ncaps, dtype=jnp.float32), Cout, axis=1)    # (Ncaps, NC)
    ET = E.T                                                           # (NC, Ncaps)

    out = pl.pallas_call(
        functools.partial(_routing_kernel, num_iterations=num_iterations),
        out_shape=jax.ShapeDtypeStruct((B, 1, NC), jnp.float32),
        grid=(B,),
        in_specs=[
            pl.BlockSpec((None, R, Cin), lambda b: (b, 0, 0)),   # x[b]
            pl.BlockSpec((R, Cin, NC), lambda b: (0, 0, 0)),     # all route weights
            pl.BlockSpec((Ncaps, NC), lambda b: (0, 0)),         # E
            pl.BlockSpec((NC, Ncaps), lambda b: (0, 0)),         # E^T
        ],
        out_specs=pl.BlockSpec((None, 1, NC), lambda b: (b, 0, 0)),
        compiler_params=pltpu.CompilerParams(dimension_semantics=("parallel",)),
    )(x, w_r, E, ET)

    # (B, 1, NC) -> (Ncaps, B, 1, 1, Cout) to match PyTorch
    out = out.reshape(B, Ncaps, Cout)
    return jnp.transpose(out, (1, 0, 2)).reshape(Ncaps, B, 1, 1, Cout)


# ----------------------------------------------------------------------------
# Conv branch (num_route_nodes == -1): matmul + bias + fused capsule squash
# ----------------------------------------------------------------------------
def _conv_caps_kernel(p_ref, w_ref, b_ref, g_ref, gt_ref, o_ref):
    # p_ref : (tm, Kp)  bf16   im2col patch tile
    # w_ref : (Kp, Cnp) bf16   columns ordered (co, n), zero-padded
    # b_ref : (1, Cnp)  f32
    # g_ref : (Cout, Cnp) f32  G[co, co*Ncaps + n] = 1
    # gt_ref: (Cnp, Cout) f32  G^T
    # o_ref : (tm, Cnp) f32    squashed output (padded cols are 0)
    y = jnp.dot(p_ref[...], w_ref[...], preferred_element_type=jnp.float32) + b_ref[...]
    # per-(row, co) sum of squares over the Ncaps capsule group (MXU)
    sq = jnp.dot(y * y, gt_ref[...], preferred_element_type=jnp.float32)   # (tm, Cout)
    scale = sq * lax.rsqrt(sq) * pl.reciprocal(1.0 + sq, approx=True)      # sqrt(sq)/(1+sq)
    o_ref[...] = y * jnp.dot(scale, g_ref[...], preferred_element_type=jnp.float32)


def capsule_conv(x, conv_w, conv_b, kernel_size, stride):
    """x: (B, Cin, H, W) NCHW; conv_w: (Ncaps, Cout, Cin, K, K); conv_b: (Ncaps, Cout)."""
    B, Cin, H, W = x.shape
    Ncaps, Cout = conv_w.shape[0], conv_w.shape[1]
    K, s = kernel_size, stride
    OH = (H - K) // s + 1
    OW = (W - K) // s + 1
    M = B * OH * OW
    Kdim = Cin * K * K
    Cn = Cout * Ncaps

    # --- im2col (host glue): rows (b, oh, ow), cols flattened (ci, ki, kj) ---
    # TODO(synk): for large inputs, build patches in-kernel from strided ref reads
    # (or use lax.conv) instead of materializing the K*K-inflated patch tensor.
    cols = []
    for ci in range(Cin):
        for ki in range(K):
            for kj in range(K):
                cols.append(x[:, ci, ki:ki + s * OH:s, kj:kj + s * OW:s])
    patches = jnp.stack(cols, axis=-1).reshape(M, Kdim)

    # pad to full (8,128)-aligned tiles; bf16 inputs, f32 MXU accumulation
    Kp = _round_up(Kdim, 128)
    Cnp = _round_up(Cn, 128)
    tm = min(512, _round_up(M, 8))
    Mp = _round_up(M, tm)

    patches = jnp.pad(patches, ((0, Mp - M), (0, Kp - Kdim))).astype(jnp.bfloat16)

    # weight matrix: (Kdim, Cn), column = co*Ncaps + n (capsule group contiguous)
    wmat = jnp.transpose(conv_w.reshape(Ncaps, Cout, Kdim), (2, 1, 0)).reshape(Kdim, Cn)
    wmat = jnp.pad(wmat, ((0, Kp - Kdim), (0, Cnp - Cn))).astype(jnp.bfloat16)
    bvec = jnp.pad(conv_b.T.reshape(1, Cn), ((0, 0), (0, Cnp - Cn))).astype(jnp.float32)

    # block-expand matrix for the capsule-group squash
    G = jnp.repeat(jnp.eye(Cout, dtype=jnp.float32), Ncaps, axis=1)    # (Cout, Cn)
    G = jnp.pad(G, ((0, 0), (0, Cnp - Cn)))                            # (Cout, Cnp)
    GT = G.T                                                           # (Cnp, Cout)

    z = pl.pallas_call(
        _conv_caps_kernel,
        out_shape=jax.ShapeDtypeStruct((Mp, Cnp), jnp.float32),
        grid=(Mp // tm,),
        in_specs=[
            pl.BlockSpec((tm, Kp), lambda i: (i, 0)),
            pl.BlockSpec((Kp, Cnp), lambda i: (0, 0)),
            pl.BlockSpec((1, Cnp), lambda i: (0, 0)),
            pl.BlockSpec((Cout, Cnp), lambda i: (0, 0)),
            pl.BlockSpec((Cnp, Cout), lambda i: (0, 0)),
        ],
        out_specs=pl.BlockSpec((tm, Cnp), lambda i: (i, 0)),
        compiler_params=pltpu.CompilerParams(dimension_semantics=("parallel",)),
    )(patches, wmat, bvec, G, GT)

    # strip padding, reorder to PyTorch layout (B, Cout*OH*OW, Ncaps)
    z = z[:M, :Cn].reshape(B, OH, OW, Cout, Ncaps)
    z = jnp.transpose(z, (0, 3, 1, 2, 4)).reshape(B, Cout * OH * OW, Ncaps)
    return z


# ----------------------------------------------------------------------------
# Module wrapper with deterministic parameter init
# ----------------------------------------------------------------------------
class CapsuleLayer:
    def __init__(self, num_capsules, num_route_nodes, in_channels, out_channels,
                 kernel_size=None, stride=None, num_iterations=NUM_ITERATIONS, key=None):
        self.num_route_nodes = num_route_nodes
        self.num_iterations = num_iterations
        self.num_capsules = num_capsules
        self.kernel_size = kernel_size
        self.stride = stride
        if num_route_nodes != -1:
            # torch.randn(num_capsules, num_route_nodes, in_channels, out_channels)
            self.route_weights = jax.random.normal(
                key, (num_capsules, num_route_nodes, in_channels, out_channels),
                jnp.float32)
        else:
            kw, kb = jax.random.split(key)
            fan_in = in_channels * kernel_size * kernel_size
            self.conv_w = jax.random.normal(
                kw, (num_capsules, out_channels, in_channels, kernel_size, kernel_size),
                jnp.float32) / jnp.sqrt(float(fan_in))
            self.conv_b = 0.01 * jax.random.normal(
                kb, (num_capsules, out_channels), jnp.float32)

    def __call__(self, x):
        if self.num_route_nodes != -1:
            return capsule_routing(x, self.route_weights, self.num_iterations)
        return capsule_conv(x, self.conv_w, self.conv_b, self.kernel_size, self.stride)


# ----------------------------------------------------------------------------
# Pure-JAX references (for correctness check only)
# ----------------------------------------------------------------------------
def _squash_ref(t, axis=-1):
    sq = jnp.sum(t * t, axis=axis, keepdims=True)
    return sq / (1.0 + sq) * t / jnp.sqrt(sq)


def _conv_caps_ref(x, conv_w, conv_b, stride):
    outs = []
    for n in range(conv_w.shape[0]):
        y = lax.conv_general_dilated(
            x, conv_w[n], (stride, stride), "VALID",
            dimension_numbers=("NCHW", "OIHW", "NCHW"),
            precision=lax.Precision.HIGHEST)
        y = y + conv_b[n][None, :, None, None]
        outs.append(y.reshape(x.shape[0], -1, 1))
    return _squash_ref(jnp.concatenate(outs, axis=-1))


def _routing_ref(x, W, iters):
    priors = jnp.einsum("bri,nric->nbrc", x, W,
                        precision=lax.Precision.HIGHEST)[:, :, :, None, :]
    logits = jnp.zeros_like(priors)
    outputs = None
    for i in range(iters):
        probs = jax.nn.softmax(logits, axis=2)
        outputs = _squash_ref(jnp.sum(probs * priors, axis=2, keepdims=True))
        if i != iters - 1:
            logits = logits + jnp.sum(priors * outputs, axis=-1, keepdims=True)
    return outputs


# ----------------------------------------------------------------------------
if __name__ == "__main__":
    key = jax.random.PRNGKey(0)
    kx, k_prim, k_digit = jax.random.split(key, 3)

    B, Cin, H, W = 2, 4, 16, 16
    x = jax.random.normal(kx, (B, Cin, H, W), jnp.float32)

    # primary capsules: conv branch (num_route_nodes = -1)
    primary = CapsuleLayer(num_capsules=8, num_route_nodes=-1, in_channels=Cin,
                           out_channels=8, kernel_size=5, stride=2, key=k_prim)
    # digit capsules: routing branch; route nodes = 8 (out_ch) * 6 * 6 spatial
    digit = CapsuleLayer(num_capsules=10, num_route_nodes=8 * 6 * 6, in_channels=8,
                         out_channels=16, key=k_digit)

    prim_out = jax.block_until_ready(primary(x))        # (2, 288, 8)
    digit_out = jax.block_until_ready(digit(prim_out))  # (10, 2, 1, 1, 16)

    assert prim_out.shape == (B, 8 * 6 * 6, 8)
    assert digit_out.shape == (10, B, 1, 1, 16)

    prim_ref = _conv_caps_ref(x, primary.conv_w, primary.conv_b, 2)
    digit_ref = _routing_ref(prim_out, digit.route_weights, NUM_ITERATIONS)
    assert jnp.allclose(prim_out, prim_ref, atol=1e-2, rtol=1e-2), "conv-caps mismatch"
    assert jnp.allclose(digit_out, digit_ref, atol=1e-2, rtol=1e-2), "routing mismatch"

    print("KERNEL_OK")
</pallas_src>

<mosaic_0001>
module attributes {stable_mosaic.version = 11 : i64} {
  func.func @_conv_caps_kernel(%arg0: i32, %arg1: memref<72x128xbf16, #tpu.memory_space<vmem>>, %arg2: memref<128x128xbf16, #tpu.memory_space<vmem>>, %arg3: memref<1x128xf32, #tpu.memory_space<vmem>>, %arg4: memref<8x128xf32, #tpu.memory_space<vmem>>, %arg5: memref<128x8xf32, #tpu.memory_space<vmem>>, %arg6: memref<72x128xf32, #tpu.memory_space<vmem>>) attributes {dimension_semantics = [#tpu.dimension_semantics<parallel>], iteration_bounds = array<i64: 1>, scalar_prefetch = 0 : i64, scratch_operands = 0 : i64, tpu.core_type = #tpu.core_type<tc>, window_params = [{transform_indices = @transform_0, window_bounds = array<i64: 72, 128>}, {pipeline_mode = #tpu.pipeline_mode<synchronous>, transform_indices = @transform_1, window_bounds = array<i64: 128, 128>}, {pipeline_mode = #tpu.pipeline_mode<synchronous>, transform_indices = @transform_2, window_bounds = array<i64: 1, 128>}, {pipeline_mode = #tpu.pipeline_mode<synchronous>, transform_indices = @transform_3, window_bounds = array<i64: 8, 128>}, {pipeline_mode = #tpu.pipeline_mode<synchronous>, transform_indices = @transform_4, window_bounds = array<i64: 128, 8>}, {transform_indices = @transform_5, window_bounds = array<i64: 72, 128>}]} {
    %c0 = arith.constant 0 : index
    %c0_0 = arith.constant 0 : index
    %0 = vector.load %arg1[%c0, %c0_0] : memref<72x128xbf16, #tpu.memory_space<vmem>>, vector<72x128xbf16>
    %c0_1 = arith.constant 0 : index
    %c0_2 = arith.constant 0 : index
    %1 = vector.load %arg2[%c0_1, %c0_2] : memref<128x128xbf16, #tpu.memory_space<vmem>>, vector<128x128xbf16>
    %cst = arith.constant dense<0.000000e+00> : vector<72x128xf32>
    %2 = tpu.matmul %0, %1, %cst {dimension_numbers = #tpu.dot_dimension_numbers<[1], [0], [0], [1], [0, 0, 1, 1], [], []>} : vector<72x128xbf16>, vector<128x128xbf16>, vector<72x128xf32> -> vector<72x128xf32>
    %c0_3 = arith.constant 0 : index
    %c0_4 = arith.constant 0 : index
    %3 = vector.load %arg3[%c0_3, %c0_4] : memref<1x128xf32, #tpu.memory_space<vmem>>, vector<1x128xf32>
    %4 = vector.broadcast %3 : vector<1x128xf32> to vector<72x128xf32>
    %5 = arith.addf %2, %4 : vector<72x128xf32>
    %6 = arith.mulf %5, %5 : vector<72x128xf32>
    %c0_5 = arith.constant 0 : index
    %c0_6 = arith.constant 0 : index
    %7 = vector.load %arg5[%c0_5, %c0_6] : memref<128x8xf32, #tpu.memory_space<vmem>>, vector<128x8xf32>
    %cst_7 = arith.constant dense<0.000000e+00> : vector<72x8xf32>
    %8 = tpu.matmul %6, %7, %cst_7 {dimension_numbers = #tpu.dot_dimension_numbers<[1], [0], [0], [1], [0, 0, 1, 1], [], []>} : vector<72x128xf32>, vector<128x8xf32>, vector<72x8xf32> -> vector<72x8xf32>
    %9 = math.rsqrt %8 : vector<72x8xf32>
    %10 = arith.mulf %8, %9 : vector<72x8xf32>
    %cst_8 = arith.constant 1.000000e+00 : f32
    %11 = vector.broadcast %cst_8 : f32 to vector<72x8xf32>
    %12 = arith.addf %11, %8 : vector<72x8xf32>
    %13 = tpu.reciprocal %12 {approx = true} : vector<72x8xf32> -> vector<72x8xf32>
    %14 = arith.mulf %10, %13 : vector<72x8xf32>
    %c0_9 = arith.constant 0 : index
    %c0_10 = arith.constant 0 : index
    %15 = vector.load %arg4[%c0_9, %c0_10] : memref<8x128xf32, #tpu.memory_space<vmem>>, vector<8x128xf32>
    %cst_11 = arith.constant dense<0.000000e+00> : vector<72x128xf32>
    %16 = tpu.matmul %14, %15, %cst_11 {dimension_numbers = #tpu.dot_dimension_numbers<[1], [0], [0], [1], [0, 0, 1, 1], [], []>} : vector<72x8xf32>, vector<8x128xf32>, vector<72x128xf32> -> vector<72x128xf32>
    %17 = arith.mulf %5, %16 : vector<72x128xf32>
    %c0_12 = arith.constant 0 : index
    %c0_13 = arith.constant 0 : index
    %18 = vector.load %arg6[%c0_12, %c0_13] : memref<72x128xf32, #tpu.memory_space<vmem>>, vector<72x128xf32>
    tpu.vector_store %arg6[%c0_12, %c0_13], %17 {strides = array<i32>} : memref<72x128xf32, #tpu.memory_space<vmem>>, vector<72x128xf32>,
    return
  }
  func.func @transform_0(%arg0: i32) -> (i32, i32) {
    %c0_i32 = arith.constant 0 : i32
    %c0_i32_0 = arith.constant 0 : i32
    return %arg0, %c0_i32 : i32, i32
  }
  func.func @transform_1(%arg0: i32) -> (i32, i32) {
    %c0_i32 = arith.constant 0 : i32
    %c0_i32_0 = arith.constant 0 : i32
    %c0_i32_1 = arith.constant 0 : i32
    return %c0_i32, %c0_i32_0 : i32, i32
  }
  func.func @transform_2(%arg0: i32) -> (i32, i32) {
    %c0_i32 = arith.constant 0 : i32
    %c0_i32_0 = arith.constant 0 : i32
    %c0_i32_1 = arith.constant 0 : i32
    return %c0_i32, %c0_i32_0 : i32, i32
  }
  func.func @transform_3(%arg0: i32) -> (i32, i32) {
    %c0_i32 = arith.constant 0 : i32
    %c0_i32_0 = arith.constant 0 : i32
    %c0_i32_1 = arith.constant 0 : i32
    return %c0_i32, %c0_i32_0 : i32, i32
  }
  func.func @transform_4(%arg0: i32) -> (i32, i32) {
    %c0_i32 = arith.constant 0 : i32
    %c0_i32_0 = arith.constant 0 : i32
    %c0_i32_1 = arith.constant 0 : i32
    return %c0_i32, %c0_i32_0 : i32, i32
  }
  func.func @transform_5(%arg0: i32) -> (i32, i32) {
    %c0_i32 = arith.constant 0 : i32
    %c0_i32_0 = arith.constant 0 : i32
    return %arg0, %c0_i32 : i32, i32
  }
}

</mosaic_0001>

<llo_original>
// kernel: tpu_custom_call.1
$region0: #{tpu_custom_call.1}
  #allocation0 [shape = 'u32[]', space=smem, size = 0x4, offset = 0x4, fixed_abs, tag = 'smem constant byte address 0x4 - core index']
  #allocation1 [shape = 'u32[144,128]{1,0:T(1,128)}', space=vmem, size = 0x12000, scoped, tag = 'internal scratch']
  %s0 = inlined_call_operand.vmem [shape: bf16[72,128], index: 0, kind: input, shape index: {}]
  %s1 = inlined_call_operand.vmem [shape: bf16[128,128], index: 1, kind: input, shape index: {}]
  %s2 = inlined_call_operand.vmem [shape: f32[1,128], index: 2, kind: input, shape index: {}]
  %s3 = inlined_call_operand.vmem [shape: f32[8,128], index: 3, kind: input, shape index: {}]
  %s4 = inlined_call_operand.vmem [shape: f32[128,8], index: 4, kind: input, shape index: {}]
  %s5 = inlined_call_operand.hbm [shape: f32[72,128], index: 5, kind: output, shape index: {}]
  %s6 = sld [smem:[#allocation0]]
  $region30: #{tpu_custom_call.1} parent=0
    _
  %s8 = ssub.s32 1, %s6
  %s9 = scalar_select 0, %s8, %s6
  $region1: #{tpu_custom_call.1} parent=0
    #allocation2 [shape = 'u8[36864]{0}', space=vmem, size = 0x9000, scoped, tag = 'output window, operand 0, single buffered']
    #allocation3 [shape = 's32[1]{0}', space=sflag, size = 0x4, scoped, tag = 'scoped memory for tpu_custom_call.1']
    %10 = vsyncpa [#allocation3], 0
    // Predicated region
    $region2: #{tpu_custom_call.1} parent=1 // pred_check
      _
    $region3: #{tpu_custom_call.1} parent=1 // pred_check_branch
      %12 = sbr.rel (0) target = $region5
    $region4: #{tpu_custom_call.1} parent=1 // pred_region
      _
    $region5: #{tpu_custom_call.1} parent=1 // pred_fallthru
      _
    // Predicated region
    $region6: #{tpu_custom_call.1} parent=1 // pred_check
      _
    $region7: #{tpu_custom_call.1} parent=1 // pred_check_branch
      %14 = sbr.rel (0) target = $region9
    $region8: #{tpu_custom_call.1} parent=1 // pred_region
      _
    $region9: #{tpu_custom_call.1} parent=1 // pred_fallthru
      _
    // Predicated region
    $region10: #{tpu_custom_call.1} parent=1 // pred_check
      _
    $region11: #{tpu_custom_call.1} parent=1 // pred_check_branch
      %16 = sbr.rel (0) target = $region13
    $region12: #{tpu_custom_call.1} parent=1 // pred_region
      _
    $region13: #{tpu_custom_call.1} parent=1 // pred_fallthru
      _
    // Predicated region
    $region14: #{tpu_custom_call.1} parent=1 // pred_check
      _
    $region15: #{tpu_custom_call.1} parent=1 // pred_check_branch
      %18 = sbr.rel (0) target = $region17
    $region16: #{tpu_custom_call.1} parent=1 // pred_region
      _
    $region17: #{tpu_custom_call.1} parent=1 // pred_fallthru
      _
    // Predicated region
    $region18: #{tpu_custom_call.1} parent=1 // pred_check
      _
    $region19: #{tpu_custom_call.1} parent=1 // pred_check_branch
      %20 = sbr.rel (0) target = $region21
    $region20: #{tpu_custom_call.1} parent=1 // pred_region
      _
    $region21: #{tpu_custom_call.1} parent=1 // pred_fallthru
      _
    %v22 = vld [vmem:[%s0] sm:$0xf]
    %v23 = vld [vmem:[%s0 + $0x4] sm:$0xf]
    %v24 = vld [vmem:[%s0 + $0x8] sm:$0xf]
    %v25 = vld [vmem:[%s0 + $0xc] sm:$0xf]
    %v26 = vld [vmem:[%s0 + $0x10] sm:$0xf]
    %v27 = vld [vmem:[%s0 + $0x14] sm:$0xf]
    %v28 = vld [vmem:[%s0 + $0x18] sm:$0xf]
    %v29 = vld [vmem:[%s0 + $0x1c] sm:$0xf]
    %v30 = vld [vmem:[%s0 + $0x20] sm:$0xf]
    %v31 = vld [vmem:[%s1] sm:$0xf]
    %v32 = vld [vmem:[%s1 + $0x4] sm:$0xf]
    %v33 = vld [vmem:[%s1 + $0x8] sm:$0xf]
    %v34 = vld [vmem:[%s1 + $0xc] sm:$0xf]
    %v35 = vld [vmem:[%s1 + $0x10] sm:$0xf]
    %v36 = vld [vmem:[%s1 + $0x14] sm:$0xf]
    %v37 = vld [vmem:[%s1 + $0x18] sm:$0xf]
    %v38 = vld [vmem:[%s1 + $0x1c] sm:$0xf]
    %v39 = vld [vmem:[%s1 + $0x20] sm:$0xf]
    %v40 = vld [vmem:[%s1 + $0x24] sm:$0xf]
    %v41 = vld [vmem:[%s1 + $0x28] sm:$0xf]
    %v42 = vld [vmem:[%s1 + $0x2c] sm:$0xf]
    %v43 = vld [vmem:[%s1 + $0x30] sm:$0xf]
    %v44 = vld [vmem:[%s1 + $0x34] sm:$0xf]
    %v45 = vld [vmem:[%s1 + $0x38] sm:$0xf]
    %v46 = vld [vmem:[%s1 + $0x3c] sm:$0xf]
    %v47 = vld [vmem:[%s2] sm:$0x1]
    %v49 = vlaneseq
    %v50 = vshrl.u32 %v49, 7
    %v51 = vsub.s32 0, %v50
    %v52 = vrot.slane %v47, %v51
    %v63 = vunpack.c.l.b16 %v22
    %v64 = vunpack.c.l.b16 %v23
    %v65 = vunpack.c.l.b16 %v24
    %v66 = vunpack.c.l.b16 %v25
    %v67 = vunpack.c.l.b16 %v26
    %v68 = vunpack.c.l.b16 %v27
    %v69 = vunpack.c.l.b16 %v28
    %v70 = vunpack.c.l.b16 %v29
    %v71 = vunpack.c.l.b16 %v30
    %v72 = vpack.c.b16 %v64, %v63
    %v73 = vpack.c.b16 %v66, %v65
    %v74 = vpack.c.b16 %v68, %v67
    %v75 = vpack.c.b16 %v70, %v69
    %v76 = vpack.c.b16 %v71, %v71
    %v98 = vunpack.c.l.b16 %v31
    %v99 = vunpack.c.l.b16 %v32
    %v100 = vunpack.c.l.b16 %v33
    %v101 = vunpack.c.l.b16 %v34
    %v102 = vunpack.c.l.b16 %v35
    %v103 = vunpack.c.l.b16 %v36
    %v104 = vunpack.c.l.b16 %v37
    %v105 = vunpack.c.l.b16 %v38
    %v106 = vunpack.c.l.b16 %v39
    %v107 = vunpack.c.l.b16 %v40
    %v108 = vunpack.c.l.b16 %v41
    %v109 = vunpack.c.l.b16 %v42
    %v110 = vunpack.c.l.b16 %v43
    %v111 = vunpack.c.l.b16 %v44
    %v112 = vunpack.c.l.b16 %v45
    %v113 = vunpack.c.l.b16 %v46
    %v114 = vpack.c.b16 %v99, %v98
    %v115 = vpack.c.b16 %v101, %v100
    %v116 = vpack.c.b16 %v103, %v102
    %v117 = vpack.c.b16 %v105, %v104
    %v118 = vpack.c.b16 %v107, %v106
    %v119 = vpack.c.b16 %v109, %v108
    %v120 = vpack.c.b16 %v111, %v110
    %v121 = vpack.c.b16 %v113, %v112
    %130 = vmatprep.subr.bf16.mxu0 0
    %131 = vmatpush1.bf16.msra.mxu0 %v114
    %132 = vmatprep.subr.bf16.mxu0 0
    %133 = vmatpush1.bf16.msra.mxu0 %v115
    %134 = vmatprep.subr.bf16.mxu0 0
    %135 = vmatpush1.bf16.msra.mxu0 %v116
    %136 = vmatprep.subr.bf16.mxu0 0
    %137 = vmatpush1.bf16.msra.mxu0 %v117
    %138 = vmatprep.subr.bf16.mxu0 0
    %139 = vmatpush1.bf16.msra.mxu0 %v118
    %140 = vmatprep.subr.bf16.mxu0 0
    %141 = vmatpush1.bf16.msra.mxu0 %v119
    %142 = vmatprep.subr.bf16.mxu0 0
    %143 = vmatpush1.bf16.msra.mxu0 %v120
    %144 = vmatprep.subr.bf16.mxu0 0
    %145 = vmatpush1.bf16.msra.mxu0 %v121
    %146 = vmatprep.subr.bf16.mxu0 0
    %147 = vmatpush1.bf16.msra.mxu0 0
    %148 = vmatprep.subr.bf16.mxu0 0
    %149 = vmatpush1.bf16.msra.mxu0 0
    %150 = vmatprep.subr.bf16.mxu0 0
    %151 = vmatpush1.bf16.msra.mxu0 0
    %152 = vmatprep.subr.bf16.mxu0 0
    %153 = vmatpush1.bf16.msra.mxu0 0
    %154 = vmatprep.subr.bf16.mxu0 0
    %155 = vmatpush1.bf16.msra.mxu0 0
    %156 = vmatprep.subr.bf16.mxu0 0
    %157 = vmatpush1.bf16.msra.mxu0 0
    %158 = vmatprep.subr.bf16.mxu0 0
    %159 = vmatpush1.bf16.msra.mxu0 0
    %160 = vmatprep.subr.bf16.mxu0 0
    %161 = vmatpush1.bf16.msra.mxu0 0
    %162 = vmatprep.mubr.bf16.mxu0 0
    %163 = vmatmul.mubr.bf16.gmra.mrb[0].mxu0 %v72
    %v164 = vpop.f32.mrb[0].mxu0
    %v165 = vadd.f32 %v52, %v164
    %v166 = vpop.f32.mrb[0].mxu0
    %v167 = vpop.f32.mrb[0].mxu0
    %v168 = vadd.f32 %v52, %v167
    %v169 = vpop.f32.mrb[0].mxu0
    %170 = vmatprep.mubr.bf16.mxu0 0
    %171 = vmatmul.mubr.bf16.gmra.mrb[0].mxu0 %v73
    %v172 = vpop.f32.mrb[0].mxu0
    %v173 = vadd.f32 %v52, %v172
    %v174 = vpop.f32.mrb[0].mxu0
    %v175 = vpop.f32.mrb[0].mxu0
    %v176 = vadd.f32 %v52, %v175
    %v177 = vpop.f32.mrb[0].mxu0
    %178 = vmatprep.mubr.bf16.mxu0 0
    %179 = vmatmul.mubr.bf16.gmra.mrb[0].mxu0 %v74
    %v180 = vpop.f32.mrb[0].mxu0
    %v181 = vadd.f32 %v52, %v180
    %v182 = vpop.f32.mrb[0].mxu0
    %v183 = vpop.f32.mrb[0].mxu0
    %v184 = vadd.f32 %v52, %v183
    %v185 = vpop.f32.mrb[0].mxu0
    %186 = vmatprep.mubr.bf16.mxu0 0
    %187 = vmatmul.mubr.bf16.gmra.mrb[0].mxu0 %v75
    %v188 = vpop.f32.mrb[0].mxu0
    %v189 = vadd.f32 %v52, %v188
    %v190 = vpop.f32.mrb[0].mxu0
    %v191 = vpop.f32.mrb[0].mxu0
    %v192 = vadd.f32 %v52, %v191
    %v193 = vpop.f32.mrb[0].mxu0
    %194 = vmatprep.mubr.bf16.mxu0 0
    %195 = vmatmul.mubr.bf16.gmra.mrb[0].mxu0 %v76
    %v196 = vpop.f32.mrb[0].mxu0
    %v197 = vadd.f32 %v52, %v196
    %v198 = vpop.f32.mrb[0].mxu0
    %v199 = vpop.f32.mrb[0].mxu0
    %v200 = vpop.f32.mrb[0].mxu0
    %201 = vdwg.mxu0
    %v202 = vmul.f32 %v165, %v165
    %v203 = vmul.f32 %v168, %v168
    %v204 = vmul.f32 %v173, %v173
    %v205 = vmul.f32 %v176, %v176
    %v206 = vmul.f32 %v181, %v181
    %v207 = vmul.f32 %v184, %v184
    %v208 = vmul.f32 %v189, %v189
    %v209 = vmul.f32 %v192, %v192
    %v210 = vmul.f32 %v197, %v197
    %v211 = vld [vmem:[%s4] sm:$0xff]
    %v212 = vld [vmem:[%s4 + $0x8] sm:$0xff]
    %v213 = vld [vmem:[%s4 + $0x10] sm:$0xff]
    %v214 = vld [vmem:[%s4 + $0x18] sm:$0xff]
    %v215 = vld [vmem:[%s4 + $0x20] sm:$0xff]
    %v216 = vld [vmem:[%s4 + $0x28] sm:$0xff]
    %v217 = vld [vmem:[%s4 + $0x30] sm:$0xff]
    %v218 = vld [vmem:[%s4 + $0x38] sm:$0xff]
    %v219 = vld [vmem:[%s4 + $0x40] sm:$0xff]
    %v220 = vld [vmem:[%s4 + $0x48] sm:$0xff]
    %v221 = vld [vmem:[%s4 + $0x50] sm:$0xff]
    %v222 = vld [vmem:[%s4 + $0x58] sm:$0xff]
    %v223 = vld [vmem:[%s4 + $0x60] sm:$0xff]
    %v224 = vld [vmem:[%s4 + $0x68] sm:$0xff]
    %v225 = vld [vmem:[%s4 + $0x70] sm:$0xff]
    %v226 = vld [vmem:[%s4 + $0x78] sm:$0xff]
    %227 = vmatprep.subr.mxu0 0.0
    %228 = vmatpush1.msra.mxu0 %v211
    %229 = vmatprep.subr.mxu0 0.0
    %230 = vmatpush1.msra.mxu0 %v212
    %231 = vmatprep.subr.mxu0 0.0
    %232 = vmatpush1.msra.mxu0 %v213
    %233 = vmatprep.subr.mxu0 0.0
    %234 = vmatpush1.msra.mxu0 %v214
    %235 = vmatprep.subr.mxu0 0.0
    %236 = vmatpush1.msra.mxu0 %v215
    %237 = vmatprep.subr.mxu0 0.0
    %238 = vmatpush1.msra.mxu0 %v216
    %239 = vmatprep.subr.mxu0 0.0
    %240 = vmatpush1.msra.mxu0 %v217
    %241 = vmatprep.subr.mxu0 0.0
    %242 = vmatpush1.msra.mxu0 %v218
    %243 = vmatprep.subr.mxu0 0.0
    %244 = vmatpush1.msra.mxu0 %v219
    %245 = vmatprep.subr.mxu0 0.0
    %246 = vmatpush1.msra.mxu0 %v220
    %247 = vmatprep.subr.mxu0 0.0
    %248 = vmatpush1.msra.mxu0 %v221
    %249 = vmatprep.subr.mxu0 0.0
    %250 = vmatpush1.msra.mxu0 %v222
    %251 = vmatprep.subr.mxu0 0.0
    %252 = vmatpush1.msra.mxu0 %v223
    %253 = vmatprep.subr.mxu0 0.0
    %254 = vmatpush1.msra.mxu0 %v224
    %255 = vmatprep.subr.mxu0 0.0
    %256 = vmatpush1.msra.mxu0 %v225
    %257 = vmatprep.subr.mxu0 0.0
    %258 = vmatpush1.msra.mxu0 %v226
    %259 = vmatprep.subr.mxu0 0.0
    %260 = vmatpush1.msra.mxu0 0.0
    %261 = vmatprep.subr.mxu0 0.0
    %262 = vmatpush1.msra.mxu0 0.0
    %263 = vmatprep.subr.mxu0 0.0
    %264 = vmatpush1.msra.mxu0 0.0
    %265 = vmatprep.subr.mxu0 0.0
    %266 = vmatpush1.msra.mxu0 0.0
    %267 = vmatprep.subr.mxu0 0.0
    %268 = vmatpush1.msra.mxu0 0.0
    %269 = vmatprep.subr.mxu0 0.0
    %270 = vmatpush1.msra.mxu0 0.0
    %271 = vmatprep.subr.mxu0 0.0
    %272 = vmatpush1.msra.mxu0 0.0
    %273 = vmatprep.subr.mxu0 0.0
    %274 = vmatpush1.msra.mxu0 0.0
    %275 = vmatprep.subr.mxu0 0.0
    %276 = vmatpush1.msra.mxu0 0.0
    %277 = vmatprep.subr.mxu0 0.0
    %278 = vmatpush1.msra.mxu0 0.0
    %279 = vmatprep.subr.mxu0 0.0
    %280 = vmatpush1.msra.mxu0 0.0
    %281 = vmatprep.subr.mxu0 0.0
    %282 = vmatpush1.msra.mxu0 0.0
    %283 = vmatprep.subr.mxu0 0.0
    %284 = vmatpush1.msra.mxu0 0.0
    %285 = vmatprep.subr.mxu0 0.0
    %286 = vmatpush1.msra.mxu0 0.0
    %287 = vmatprep.subr.mxu0 0.0
    %288 = vmatpush1.msra.mxu0 0.0
    %289 = vmatprep.subr.mxu0 0.0
    %290 = vmatpush1.msra.mxu0 0.0
    %291 = vmatprep.mubr.f32.mxu0 0.0
    %292 = vmatmul.mubr.f32.gmra.mrb[0].mxu0 %v202
    %v293 = vpop.f32.mrb[0].mxu0
    %v294 = vadd.f32 0.0, %v293
    %v295 = vpop.f32.mrb[0].mxu0
    %296 = vmatprep.mubr.f32.mxu0 0.0
    %297 = vmatmul.mubr.f32.gmra.mrb[0].mxu0 %v203
    %v298 = vpop.f32.mrb[0].mxu0
    %v299 = vadd.f32 0.0, %v298
    %v300 = vpop.f32.mrb[0].mxu0
    %301 = vmatprep.mubr.f32.mxu0 0.0
    %302 = vmatmul.mubr.f32.gmra.mrb[0].mxu0 %v204
    %v303 = vpop.f32.mrb[0].mxu0
    %v304 = vadd.f32 0.0, %v303
    %v305 = vpop.f32.mrb[0].mxu0
    %306 = vmatprep.mubr.f32.mxu0 0.0
    %307 = vmatmul.mubr.f32.gmra.mrb[0].mxu0 %v205
    %v308 = vpop.f32.mrb[0].mxu0
    %v309 = vadd.f32 0.0, %v308
    %v310 = vpop.f32.mrb[0].mxu0
    %311 = vmatprep.mubr.f32.mxu0 0.0
    %312 = vmatmul.mubr.f32.gmra.mrb[0].mxu0 %v206
    %v313 = vpop.f32.mrb[0].mxu0
    %v314 = vadd.f32 0.0, %v313
    %v315 = vpop.f32.mrb[0].mxu0
    %316 = vmatprep.mubr.f32.mxu0 0.0
    %317 = vmatmul.mubr.f32.gmra.mrb[0].mxu0 %v207
    %v318 = vpop.f32.mrb[0].mxu0
    %v319 = vadd.f32 0.0, %v318
    %v320 = vpop.f32.mrb[0].mxu0
    %321 = vmatprep.mubr.f32.mxu0 0.0
    %322 = vmatmul.mubr.f32.gmra.mrb[0].mxu0 %v208
    %v323 = vpop.f32.mrb[0].mxu0
    %v324 = vadd.f32 0.0, %v323
    %v325 = vpop.f32.mrb[0].mxu0
    %326 = vmatprep.mubr.f32.mxu0 0.0
    %327 = vmatmul.mubr.f32.gmra.mrb[0].mxu0 %v209
    %v328 = vpop.f32.mrb[0].mxu0
    %v329 = vadd.f32 0.0, %v328
    %v330 = vpop.f32.mrb[0].mxu0
    %331 = vmatprep.mubr.f32.mxu0 0.0
    %332 = vmatmul.mubr.f32.gmra.mrb[0].mxu0 %v210
    %v333 = vpop.f32.mrb[0].mxu0
    %v334 = vadd.f32 0.0, %v333
    %v335 = vpop.f32.mrb[0].mxu0
    %336 = vdwg.mxu0
    %v337 = vrsqrt.pop %v294
    %v338 = vrsqrt.pop %v299
    %v339 = vrsqrt.pop %v304
    %v340 = vrsqrt.pop %v309
    %v341 = vrsqrt.pop %v314
    %v342 = vrsqrt.pop %v319
    %v343 = vrsqrt.pop %v324
    %v344 = vrsqrt.pop %v329
    %v345 = vrsqrt.pop %v334
    %v346 = vmul.f32 %v294, %v337
    %v347 = vmul.f32 %v299, %v338
    %v348 = vmul.f32 %v304, %v339
    %v349 = vmul.f32 %v309, %v340
    %v350 = vmul.f32 %v314, %v341
    %v351 = vmul.f32 %v319, %v342
    %v352 = vmul.f32 %v324, %v343
    %v353 = vmul.f32 %v329, %v344
    %v354 = vmul.f32 %v334, %v345
    %v355 = vadd.f32 %v294, 1.0
    %v356 = vadd.f32 %v299, 1.0
    %v357 = vadd.f32 %v304, 1.0
    %v358 = vadd.f32 %v309, 1.0
    %v359 = vadd.f32 %v314, 1.0
    %v360 = vadd.f32 %v319, 1.0
    %v361 = vadd.f32 %v324, 1.0
    %v362 = vadd.f32 %v329, 1.0
    %v363 = vadd.f32 %v334, 1.0
    %v364 = vrcp.pop %v355
    %v365 = vrcp.pop %v356
    %v366 = vrcp.pop %v357
    %v367 = vrcp.pop %v358
    %v368 = vrcp.pop %v359
    %v369 = vrcp.pop %v360
    %v370 = vrcp.pop %v361
    %v371 = vrcp.pop %v362
    %v372 = vrcp.pop %v363
    %v373 = vmul.f32 %v346, %v364
    %v374 = vmul.f32 %v347, %v365
    %v375 = vmul.f32 %v348, %v366
    %v376 = vmul.f32 %v349, %v367
    %v377 = vmul.f32 %v350, %v368
    %v378 = vmul.f32 %v351, %v369
    %v379 = vmul.f32 %v352, %v370
    %v380 = vmul.f32 %v353, %v371
    %v381 = vmul.f32 %v354, %v372
    %v382 = vld [vmem:[%s3] sm:$0xff]
    %vm383 = vcmask 64512
    %v385 = vsel %vm383, %v373, 0
    %v388 = vsel %vm383, %v374, 0
    %v391 = vsel %vm383, %v375, 0
    %v394 = vsel %vm383, %v376, 0
    %v397 = vsel %vm383, %v377, 0
    %v400 = vsel %vm383, %v378, 0
    %v403 = vsel %vm383, %v379, 0
    %v406 = vsel %vm383, %v380, 0
    %v409 = vsel %vm383, %v381, 0
    %411 = vmatprep.subr.mxu0 0.0
    %412 = vmatpush1.msra.mxu0 %v382
    %413 = vmatprep.subr.mxu0 0.0
    %414 = vmatpush1.msra.mxu0 0.0
    %415 = vmatprep.subr.mxu0 0.0
    %416 = vmatpush1.msra.mxu0 0.0
    %417 = vmatprep.subr.mxu0 0.0
    %418 = vmatpush1.msra.mxu0 0.0
    %419 = vmatprep.subr.mxu0 0.0
    %420 = vmatpush1.msra.mxu0 0.0
    %421 = vmatprep.subr.mxu0 0.0
    %422 = vmatpush1.msra.mxu0 0.0
    %423 = vmatprep.subr.mxu0 0.0
    %424 = vmatpush1.msra.mxu0 0.0
    %425 = vmatprep.subr.mxu0 0.0
    %426 = vmatpush1.msra.mxu0 0.0
    %427 = vmatprep.subr.mxu0 0.0
    %428 = vmatpush1.msra.mxu0 0.0
    %429 = vmatprep.subr.mxu0 0.0
    %430 = vmatpush1.msra.mxu0 0.0
    %431 = vmatprep.subr.mxu0 0.0
    %432 = vmatpush1.msra.mxu0 0.0
    %433 = vmatprep.subr.mxu0 0.0
    %434 = vmatpush1.msra.mxu0 0.0
    %435 = vmatprep.subr.mxu0 0.0
    %436 = vmatpush1.msra.mxu0 0.0
    %437 = vmatprep.subr.mxu0 0.0
    %438 = vmatpush1.msra.mxu0 0.0
    %439 = vmatprep.subr.mxu0 0.0
    %440 = vmatpush1.msra.mxu0 0.0
    %441 = vmatprep.subr.mxu0 0.0
    %442 = vmatpush1.msra.mxu0 0.0
    %443 = vmatprep.subr.mxu0 0.0
    %444 = vmatpush1.msra.mxu0 0.0
    %445 = vmatprep.subr.mxu0 0.0
    %446 = vmatpush1.msra.mxu0 0.0
    %447 = vmatprep.subr.mxu0 0.0
    %448 = vmatpush1.msra.mxu0 0.0
    %449 = vmatprep.subr.mxu0 0.0
    %450 = vmatpush1.msra.mxu0 0.0
    %451 = vmatprep.subr.mxu0 0.0
    %452 = vmatpush1.msra.mxu0 0.0
    %453 = vmatprep.subr.mxu0 0.0
    %454 = vmatpush1.msra.mxu0 0.0
    %455 = vmatprep.subr.mxu0 0.0
    %456 = vmatpush1.msra.mxu0 0.0
    %457 = vmatprep.subr.mxu0 0.0
    %458 = vmatpush1.msra.mxu0 0.0
    %459 = vmatprep.subr.mxu0 0.0
    %460 = vmatpush1.msra.mxu0 0.0
    %461 = vmatprep.subr.mxu0 0.0
    %462 = vmatpush1.msra.mxu0 0.0
    %463 = vmatprep.subr.mxu0 0.0
    %464 = vmatpush1.msra.mxu0 0.0
    %465 = vmatprep.subr.mxu0 0.0
    %466 = vmatpush1.msra.mxu0 0.0
    %467 = vmatprep.subr.mxu0 0.0
    %468 = vmatpush1.msra.mxu0 0.0
    %469 = vmatprep.subr.mxu0 0.0
    %470 = vmatpush1.msra.mxu0 0.0
    %471 = vmatprep.subr.mxu0 0.0
    %472 = vmatpush1.msra.mxu0 0.0
    %473 = vmatprep.subr.mxu0 0.0
    %474 = vmatpush1.msra.mxu0 0.0
    %475 = vmatprep.mubr.f32.mxu0 0.0
    %476 = vmatmul.mubr.f32.gmra.mrb[0].mxu0 %v385
    %v477 = vpop.f32.mrb[0].mxu0
    %v478 = vadd.f32 0.0, %v477
    %v479 = vpop.f32.mrb[0].mxu0
    %480 = vmatprep.mubr.f32.mxu0 0.0
    %481 = vmatmul.mubr.f32.gmra.mrb[0].mxu0 %v388
    %v482 = vpop.f32.mrb[0].mxu0
    %v483 = vadd.f32 0.0, %v482
    %v484 = vpop.f32.mrb[0].mxu0
    %485 = vmatprep.mubr.f32.mxu0 0.0
    %486 = vmatmul.mubr.f32.gmra.mrb[0].mxu0 %v391
    %v487 = vpop.f32.mrb[0].mxu0
    %v488 = vadd.f32 0.0, %v487
    %v489 = vpop.f32.mrb[0].mxu0
    %490 = vmatprep.mubr.f32.mxu0 0.0
    %491 = vmatmul.mubr.f32.gmra.mrb[0].mxu0 %v394
    %v492 = vpop.f32.mrb[0].mxu0
    %v493 = vadd.f32 0.0, %v492
    %v494 = vpop.f32.mrb[0].mxu0
    %495 = vmatprep.mubr.f32.mxu0 0.0
    %496 = vmatmul.mubr.f32.gmra.mrb[0].mxu0 %v397
    %v497 = vpop.f32.mrb[0].mxu0
    %v498 = vadd.f32 0.0, %v497
    %v499 = vpop.f32.mrb[0].mxu0
    %500 = vmatprep.mubr.f32.mxu0 0.0
    %501 = vmatmul.mubr.f32.gmra.mrb[0].mxu0 %v400
    %v502 = vpop.f32.mrb[0].mxu0
    %v503 = vadd.f32 0.0, %v502
    %v504 = vpop.f32.mrb[0].mxu0
    %505 = vmatprep.mubr.f32.mxu0 0.0
    %506 = vmatmul.mubr.f32.gmra.mrb[0].mxu0 %v403
    %v507 = vpop.f32.mrb[0].mxu0
    %v508 = vadd.f32 0.0, %v507
    %v509 = vpop.f32.mrb[0].mxu0
    %510 = vmatprep.mubr.f32.mxu0 0.0
    %511 = vmatmul.mubr.f32.gmra.mrb[0].mxu0 %v406
    %v512 = vpop.f32.mrb[0].mxu0
    %v513 = vadd.f32 0.0, %v512
    %v514 = vpop.f32.mrb[0].mxu0
    %515 = vmatprep.mubr.f32.mxu0 0.0
    %516 = vmatmul.mubr.f32.gmra.mrb[0].mxu0 %v409
    %v517 = vpop.f32.mrb[0].mxu0
    %v518 = vadd.f32 0.0, %v517
    %v519 = vpop.f32.mrb[0].mxu0
    %520 = vdwg.mxu0
    %v521 = vmul.f32 %v165, %v478
    %v522 = vmul.f32 %v168, %v483
    %v523 = vmul.f32 %v173, %v488
    %v524 = vmul.f32 %v176, %v493
    %v525 = vmul.f32 %v181, %v498
    %v526 = vmul.f32 %v184, %v503
    %v527 = vmul.f32 %v189, %v508
    %v528 = vmul.f32 %v192, %v513
    %v529 = vmul.f32 %v197, %v518
    %530 = vst [vmem:[#allocation2] sm:$0xff] %v521
    %531 = vst [vmem:[#allocation2 + $0x8] sm:$0xff] %v522
    %532 = vst [vmem:[#allocation2 + $0x10] sm:$0xff] %v523
    %533 = vst [vmem:[#allocation2 + $0x18] sm:$0xff] %v524
    %534 = vst [vmem:[#allocation2 + $0x20] sm:$0xff] %v525
    %535 = vst [vmem:[#allocation2 + $0x28] sm:$0xff] %v526
    %536 = vst [vmem:[#allocation2 + $0x30] sm:$0xff] %v527
    %537 = vst [vmem:[#allocation2 + $0x38] sm:$0xff] %v528
    %538 = vst [vmem:[#allocation2 + $0x40] sm:$0xff] %v529
    // Predicated region
    $region22: #{tpu_custom_call.1} parent=1 // pred_check
      _
    $region23: #{tpu_custom_call.1} parent=1 // pred_check_branch
      %540 = sbr.rel (0) target = $region25
    $region24: #{tpu_custom_call.1} parent=1 // pred_region
      %s542 = ssub.s32 1152, 1152
      %543 = vsyncadd [#allocation3], %s542
      %s544 = sshll.u32 [#allocation2], 4
      %s545 = int_to_ptr.vmem [resolvable:$true] %s544
      %550 = dma.vmem_to_hbm [thread:$0]  %s545, 1152, %s5, [#allocation3], 128, 128, 8
    $region25: #{tpu_custom_call.1} parent=1 // pred_fallthru
      _
    // Predicated region
    $region26: #{tpu_custom_call.1} parent=1 // pred_check
      _
    $region27: #{tpu_custom_call.1} parent=1 // pred_check_branch
      %552 = sbr.rel (0) target = $region29
    $region28: #{tpu_custom_call.1} parent=1 // pred_region
      %553 = dma.done [#allocation3], 1152
    $region29: #{tpu_custom_call.1} parent=1 // pred_fallthru
      _
    %554 = vsyncpa [#allocation3], 1

</llo_original>
